<compile_context>
chip_gen: v6e
topology: v6e:2x2x1
jax: 0.10.0
libtpu: 0.0.40
codegen_flags: <defaults>
</compile_context>

<pallas_src>
import jax
import jax.numpy as jnp
from jax import lax
from jax.experimental import pallas as pl
from jax.experimental.pallas import tpu as pltpu

K = 4            # conv kernel size (all layers)
L_PAD = 128      # lane-dense working width inside the kernel
HALF = L_PAD // 2
STRIDES = (1, 2, 1, 2)
ACTS = ("relu", "relu", "relu", "sigmoid")


def _disc_kernel(x_ref, dec_ref, w1_ref, b1_ref, w2_ref, b2_ref,
                 w3_ref, b3_ref, w4_ref, b4_ref, o_ref):
    f32 = jnp.float32

    def im2col(h):
        # result[k*C + c, l] = h[c, (l + k) mod L_PAD]
        # Lane shift via XLU rotate (pltpu.roll); shift = L_PAD - k == -k mod 128.
        # Sublane stack is 8-aligned for every layer (C in {16,128,64,32}).
        parts = [h]
        for k in range(1, K):
            parts.append(pltpu.roll(h, shift=L_PAD - k, axis=1))
        return jnp.concatenate(parts, axis=0)

    dec = dec_ref[...]                                          # (128,128) block-diag 0/1
    x = x_ref[0]                                                # (16, 128), both batches packed

    # Layer 1: Conv1d(16 -> 128, k=4, s=1) + ReLU   (channel 15 is zero-padded)
    h1 = jnp.maximum(
        jnp.dot(w1_ref[...], im2col(x), preferred_element_type=f32)
        + b1_ref[...], 0.0)                                     # (128, 128)

    # Layer 2: Conv1d(128 -> 64, k=4, s=2) + ReLU (stride via block-diag decimation)
    y2 = jnp.maximum(
        jnp.dot(w2_ref[...], im2col(h1), preferred_element_type=f32)
        + b2_ref[...], 0.0)                                     # (64, 128), stride-1 cols
    h2 = jnp.dot(y2, dec, preferred_element_type=f32)           # (64, 128), even cols packed per half

    # Layer 3: Conv1d(64 -> 32, k=4, s=1) + ReLU
    h3 = jnp.maximum(
        jnp.dot(w3_ref[...], im2col(h2), preferred_element_type=f32)
        + b3_ref[...], 0.0)                                     # (32, 128)

    # Layer 4: Conv1d(32 -> 1, k=4, s=2) + Sigmoid.
    # VPU multiply + sublane reduce on the stride-1 row; the stride-2 pick of
    # the single output row is deferred to the wrapper (tiny strided slice).
    y4 = jnp.sum(w4_ref[...] * im2col(h3), axis=0, keepdims=True) + b4_ref[...]
    o_ref[0] = jax.nn.sigmoid(y4).astype(o_ref.dtype)           # (1, 128)


def _prep_params(params):
    """Flatten weights to (C_out, K*C_in) with row index k*C_in + c; biases -> (C,1).

    Input channels are zero-padded to a multiple of 8 (15 -> 16 for layer 1) so
    the in-kernel im2col sublane stack is vreg-aligned.
    """
    flat = []
    for w, b in params:
        w = jnp.asarray(w, jnp.float32)
        b = jnp.asarray(b, jnp.float32)
        c_out, c_in, k = w.shape
        c_pad = (-c_in) % 8
        if c_pad:
            w = jnp.pad(w, ((0, 0), (0, c_pad), (0, 0)))
            c_in += c_pad
        wf = jnp.transpose(w, (0, 2, 1)).reshape(c_out, k * c_in)
        bf = b.reshape(c_out, 1)
        flat.append((wf, bf))
    return flat


def discriminator_forward(x, params):
    """Fused 4-layer discriminator forward in a single Pallas kernel."""
    n, c_in, l_in = x.shape
    assert n % 2 == 0, "packed variant pairs batch elements (n must be even)"
    assert l_in <= HALF, "each batch element must fit one 64-lane half"
    l1 = l_in - K + 1            # 61
    l2 = (l1 - K) // 2 + 1       # 29
    l3 = l2 - K + 1              # 26
    l4 = (l3 - K) // 2 + 1       # 12
    assert l4 >= 1

    (w1, b1), (w2, b2), (w3, b3), (w4, b4) = _prep_params(params)
    w4c = w4.T                   # (K*C_in, 1) = (128, 1) column for the VPU reduction
    c_in_p = w1.shape[1] // K    # 16 (padded input channels)

    # Pad channels/length and pack pairs of batch elements into the 128 lanes:
    # batch 2p -> lanes 0..HALF-1, batch 2p+1 -> lanes HALF..127.
    xp = jnp.pad(x.astype(jnp.float32),
                 ((0, 0), (0, c_in_p - c_in), (0, HALF - l_in)))     # (n, 16, 64)
    xp = xp.reshape(n // 2, 2, c_in_p, HALF)
    xp = jnp.transpose(xp, (0, 2, 1, 3)).reshape(n // 2, c_in_p, L_PAD)

    # Block-diagonal stride-2 decimation: dec[l, m] = 1 iff l and m are in the
    # same 64-lane half and (l % 64) == 2*(m % 64). Passed as a resident input.
    row = jnp.arange(L_PAD)[:, None]
    col = jnp.arange(L_PAD)[None, :]
    dec = (((row // HALF) == (col // HALF))
           & ((row % HALF) == 2 * (col % HALF))).astype(jnp.float32)

    out_full = pl.pallas_call(
        _disc_kernel,
        out_shape=jax.ShapeDtypeStruct((n // 2, 1, L_PAD), jnp.float32),
        grid=(n // 2,),
        in_specs=[
            pl.BlockSpec((1, c_in_p, L_PAD), lambda i: (i, 0, 0)),
            pl.BlockSpec(dec.shape, lambda i: (0, 0)),
            pl.BlockSpec(w1.shape, lambda i: (0, 0)),
            pl.BlockSpec(b1.shape, lambda i: (0, 0)),
            pl.BlockSpec(w2.shape, lambda i: (0, 0)),
            pl.BlockSpec(b2.shape, lambda i: (0, 0)),
            pl.BlockSpec(w3.shape, lambda i: (0, 0)),
            pl.BlockSpec(b3.shape, lambda i: (0, 0)),
            pl.BlockSpec(w4c.shape, lambda i: (0, 0)),
            pl.BlockSpec(b4.shape, lambda i: (0, 0)),
        ],
        out_specs=pl.BlockSpec((1, 1, L_PAD), lambda i: (i, 0, 0)),
        compiler_params=pltpu.CompilerParams(
            dimension_semantics=("parallel",)),
    )(xp, dec, w1, b1, w2, b2, w3, b3, w4c, b4)

    # Unpack: row r's stride-2 outputs live at lanes 0,2,...,2*(l4-1) of its half.
    out = out_full.reshape(n, HALF)[:, 0:2 * l4:2]
    return out.reshape(n, 1, l4).astype(x.dtype)


def init_params(key, ncf=32):
    shapes = [
        (ncf << 2, 15, K),        # Conv1d(15, 128, 4, 1)
        (ncf << 1, ncf << 2, K),  # Conv1d(128, 64, 4, 2)
        (ncf, ncf << 1, K),       # Conv1d(64, 32, 4, 1)
        (1, ncf, K),              # Conv1d(32, 1, 4, 2)
    ]
    params = []
    for shp in shapes:
        key, kw, kb = jax.random.split(key, 3)
        w = jax.random.normal(kw, shp, jnp.float32) * 0.05
        b = jax.random.normal(kb, (shp[0],), jnp.float32) * 0.05
        params.append((w, b))
    return params


def discriminator_reference(x, params):
    """Pure-JAX reference for correctness checking."""
    h = x
    for (w, b), s, a in zip(params, STRIDES, ACTS):
        h = lax.conv_general_dilated(
            h, w, window_strides=(s,), padding="VALID",
            dimension_numbers=("NCH", "OIH", "NCH"))
        h = h + b[None, :, None]
        h = jnp.maximum(h, 0.0) if a == "relu" else jax.nn.sigmoid(h)
    return h


if __name__ == "__main__":
    key = jax.random.PRNGKey(0)
    kp, kx = jax.random.split(key)
    params = init_params(kp, ncf=32)

    # Input: batch=2, in_channels=15 (fixed by the module), length=64.
    x = jax.random.normal(kx, (2, 15, 64), jnp.float32)

    out = jax.block_until_ready(discriminator_forward(x, params))
    ref = jax.block_until_ready(discriminator_reference(x, params))

    assert out.shape == ref.shape, (out.shape, ref.shape)
    assert jnp.allclose(out, ref, atol=5e-4, rtol=5e-4), "mismatch vs reference"

    print("KERNEL_OK")
</pallas_src>

<mosaic_0001>
module attributes {stable_mosaic.version = 11 : i64} {
  func.func @_disc_kernel(%arg0: i32, %arg1: memref<1x16x128xf32, #tpu.memory_space<vmem>>, %arg2: memref<128x128xf32, #tpu.memory_space<vmem>>, %arg3: memref<128x64xf32, #tpu.memory_space<vmem>>, %arg4: memref<128x1xf32, #tpu.memory_space<vmem>>, %arg5: memref<64x512xf32, #tpu.memory_space<vmem>>, %arg6: memref<64x1xf32, #tpu.memory_space<vmem>>, %arg7: memref<32x256xf32, #tpu.memory_space<vmem>>, %arg8: memref<32x1xf32, #tpu.memory_space<vmem>>, %arg9: memref<128x1xf32, #tpu.memory_space<vmem>>, %arg10: memref<1x1xf32, #tpu.memory_space<vmem>>, %arg11: memref<1x1x128xf32, #tpu.memory_space<vmem>>) attributes {dimension_semantics = [#tpu.dimension_semantics<parallel>], iteration_bounds = array<i64: 1>, scalar_prefetch = 0 : i64, scratch_operands = 0 : i64, tpu.core_type = #tpu.core_type<tc>, window_params = [{transform_indices = @transform_0, window_bounds = array<i64: 1, 16, 128>}, {pipeline_mode = #tpu.pipeline_mode<synchronous>, transform_indices = @transform_1, window_bounds = array<i64: 128, 128>}, {pipeline_mode = #tpu.pipeline_mode<synchronous>, transform_indices = @transform_2, window_bounds = array<i64: 128, 64>}, {pipeline_mode = #tpu.pipeline_mode<synchronous>, transform_indices = @transform_3, window_bounds = array<i64: 128, 1>}, {pipeline_mode = #tpu.pipeline_mode<synchronous>, transform_indices = @transform_4, window_bounds = array<i64: 64, 512>}, {pipeline_mode = #tpu.pipeline_mode<synchronous>, transform_indices = @transform_5, window_bounds = array<i64: 64, 1>}, {pipeline_mode = #tpu.pipeline_mode<synchronous>, transform_indices = @transform_6, window_bounds = array<i64: 32, 256>}, {pipeline_mode = #tpu.pipeline_mode<synchronous>, transform_indices = @transform_7, window_bounds = array<i64: 32, 1>}, {pipeline_mode = #tpu.pipeline_mode<synchronous>, transform_indices = @transform_8, window_bounds = array<i64: 128, 1>}, {pipeline_mode = #tpu.pipeline_mode<synchronous>, transform_indices = @transform_9, window_bounds = array<i64: 1, 1>}, {transform_indices = @transform_10, window_bounds = array<i64: 1, 1, 128>}]} {
    %c0 = arith.constant 0 : index
    %c0_0 = arith.constant 0 : index
    %0 = vector.load %arg2[%c0, %c0_0] : memref<128x128xf32, #tpu.memory_space<vmem>>, vector<128x128xf32>
    %c0_1 = arith.constant 0 : index
    %c0_2 = arith.constant 0 : index
    %c0_3 = arith.constant 0 : index
    %1 = vector.load %arg1[%c0_1, %c0_2, %c0_3] : memref<1x16x128xf32, #tpu.memory_space<vmem>>, vector<1x16x128xf32>
    %2 = vector.shape_cast %1 : vector<1x16x128xf32> to vector<16x128xf32>
    %c0_4 = arith.constant 0 : index
    %c0_5 = arith.constant 0 : index
    %3 = vector.load %arg3[%c0_4, %c0_5] : memref<128x64xf32, #tpu.memory_space<vmem>>, vector<128x64xf32>
    %c127_i32 = arith.constant 127 : i32
    %4 = tpu.dynamic_rotate %2 by %c127_i32 dim 1 : vector<16x128xf32>, i32 -> vector<16x128xf32>
    %c126_i32 = arith.constant 126 : i32
    %5 = tpu.dynamic_rotate %2 by %c126_i32 dim 1 : vector<16x128xf32>, i32 -> vector<16x128xf32>
    %c125_i32 = arith.constant 125 : i32
    %6 = tpu.dynamic_rotate %2 by %c125_i32 dim 1 : vector<16x128xf32>, i32 -> vector<16x128xf32>
    %7 = tpu.concatenate %2, %4, %5, %6 in 0 : vector<16x128xf32>, vector<16x128xf32>, vector<16x128xf32>, vector<16x128xf32> -> vector<64x128xf32>
    %cst = arith.constant dense<0.000000e+00> : vector<128x128xf32>
    %8 = tpu.matmul %3, %7, %cst {dimension_numbers = #tpu.dot_dimension_numbers<[1], [0], [0], [1], [0, 0, 1, 1], [], []>} : vector<128x64xf32>, vector<64x128xf32>, vector<128x128xf32> -> vector<128x128xf32>
    %c0_6 = arith.constant 0 : index
    %c0_7 = arith.constant 0 : index
    %9 = vector.load %arg4[%c0_6, %c0_7] : memref<128x1xf32, #tpu.memory_space<vmem>>, vector<128x1xf32>
    %10 = vector.broadcast %9 : vector<128x1xf32> to vector<128x128xf32>
    %11 = arith.addf %8, %10 : vector<128x128xf32>
    %cst_8 = arith.constant 0.000000e+00 : f32
    %12 = vector.broadcast %cst_8 : f32 to vector<128x128xf32>
    %13 = arith.maximumf %11, %12 : vector<128x128xf32>
    %c0_9 = arith.constant 0 : index
    %c0_10 = arith.constant 0 : index
    %14 = vector.load %arg5[%c0_9, %c0_10] : memref<64x512xf32, #tpu.memory_space<vmem>>, vector<64x512xf32>
    %c127_i32_11 = arith.constant 127 : i32
    %15 = tpu.dynamic_rotate %13 by %c127_i32_11 dim 1 : vector<128x128xf32>, i32 -> vector<128x128xf32>
    %c126_i32_12 = arith.constant 126 : i32
    %16 = tpu.dynamic_rotate %13 by %c126_i32_12 dim 1 : vector<128x128xf32>, i32 -> vector<128x128xf32>
    %c125_i32_13 = arith.constant 125 : i32
    %17 = tpu.dynamic_rotate %13 by %c125_i32_13 dim 1 : vector<128x128xf32>, i32 -> vector<128x128xf32>
    %18 = tpu.concatenate %13, %15, %16, %17 in 0 : vector<128x128xf32>, vector<128x128xf32>, vector<128x128xf32>, vector<128x128xf32> -> vector<512x128xf32>
    %cst_14 = arith.constant dense<0.000000e+00> : vector<64x128xf32>
    %19 = tpu.matmul %14, %18, %cst_14 {dimension_numbers = #tpu.dot_dimension_numbers<[1], [0], [0], [1], [0, 0, 1, 1], [], []>} : vector<64x512xf32>, vector<512x128xf32>, vector<64x128xf32> -> vector<64x128xf32>
    %c0_15 = arith.constant 0 : index
    %c0_16 = arith.constant 0 : index
    %20 = vector.load %arg6[%c0_15, %c0_16] : memref<64x1xf32, #tpu.memory_space<vmem>>, vector<64x1xf32>
    %21 = vector.broadcast %20 : vector<64x1xf32> to vector<64x128xf32>
    %22 = arith.addf %19, %21 : vector<64x128xf32>
    %cst_17 = arith.constant 0.000000e+00 : f32
    %23 = vector.broadcast %cst_17 : f32 to vector<64x128xf32>
    %24 = arith.maximumf %22, %23 : vector<64x128xf32>
    %cst_18 = arith.constant dense<0.000000e+00> : vector<64x128xf32>
    %25 = tpu.matmul %24, %0, %cst_18 {dimension_numbers = #tpu.dot_dimension_numbers<[1], [0], [0], [1], [0, 0, 1, 1], [], []>} : vector<64x128xf32>, vector<128x128xf32>, vector<64x128xf32> -> vector<64x128xf32>
    %c0_19 = arith.constant 0 : index
    %c0_20 = arith.constant 0 : index
    %26 = vector.load %arg7[%c0_19, %c0_20] : memref<32x256xf32, #tpu.memory_space<vmem>>, vector<32x256xf32>
    %c127_i32_21 = arith.constant 127 : i32
    %27 = tpu.dynamic_rotate %25 by %c127_i32_21 dim 1 : vector<64x128xf32>, i32 -> vector<64x128xf32>
    %c126_i32_22 = arith.constant 126 : i32
    %28 = tpu.dynamic_rotate %25 by %c126_i32_22 dim 1 : vector<64x128xf32>, i32 -> vector<64x128xf32>
    %c125_i32_23 = arith.constant 125 : i32
    %29 = tpu.dynamic_rotate %25 by %c125_i32_23 dim 1 : vector<64x128xf32>, i32 -> vector<64x128xf32>
    %30 = tpu.concatenate %25, %27, %28, %29 in 0 : vector<64x128xf32>, vector<64x128xf32>, vector<64x128xf32>, vector<64x128xf32> -> vector<256x128xf32>
    %cst_24 = arith.constant dense<0.000000e+00> : vector<32x128xf32>
    %31 = tpu.matmul %26, %30, %cst_24 {dimension_numbers = #tpu.dot_dimension_numbers<[1], [0], [0], [1], [0, 0, 1, 1], [], []>} : vector<32x256xf32>, vector<256x128xf32>, vector<32x128xf32> -> vector<32x128xf32>
    %c0_25 = arith.constant 0 : index
    %c0_26 = arith.constant 0 : index
    %32 = vector.load %arg8[%c0_25, %c0_26] : memref<32x1xf32, #tpu.memory_space<vmem>>, vector<32x1xf32>
    %33 = vector.broadcast %32 : vector<32x1xf32> to vector<32x128xf32>
    %34 = arith.addf %31, %33 : vector<32x128xf32>
    %cst_27 = arith.constant 0.000000e+00 : f32
    %35 = vector.broadcast %cst_27 : f32 to vector<32x128xf32>
    %36 = arith.maximumf %34, %35 : vector<32x128xf32>
    %c0_28 = arith.constant 0 : index
    %c0_29 = arith.constant 0 : index
    %37 = vector.load %arg9[%c0_28, %c0_29] : memref<128x1xf32, #tpu.memory_space<vmem>>, vector<128x1xf32>
    %c127_i32_30 = arith.constant 127 : i32
    %38 = tpu.dynamic_rotate %36 by %c127_i32_30 dim 1 : vector<32x128xf32>, i32 -> vector<32x128xf32>
    %c126_i32_31 = arith.constant 126 : i32
    %39 = tpu.dynamic_rotate %36 by %c126_i32_31 dim 1 : vector<32x128xf32>, i32 -> vector<32x128xf32>
    %c125_i32_32 = arith.constant 125 : i32
    %40 = tpu.dynamic_rotate %36 by %c125_i32_32 dim 1 : vector<32x128xf32>, i32 -> vector<32x128xf32>
    %41 = tpu.concatenate %36, %38, %39, %40 in 0 : vector<32x128xf32>, vector<32x128xf32>, vector<32x128xf32>, vector<32x128xf32> -> vector<128x128xf32>
    %42 = vector.broadcast %37 : vector<128x1xf32> to vector<128x128xf32>
    %43 = arith.mulf %42, %41 : vector<128x128xf32>
    %cst_33 = arith.constant dense<0.000000e+00> : vector<128xf32>
    %44 = vector.multi_reduction <add>, %43, %cst_33 [0] : vector<128x128xf32> to vector<128xf32>
    %45 = vector.shape_cast %44 : vector<128xf32> to vector<1x128xf32>
    %c0_34 = arith.constant 0 : index
    %c0_35 = arith.constant 0 : index
    %46 = vector.load %arg10[%c0_34, %c0_35] : memref<1x1xf32, #tpu.memory_space<vmem>>, vector<1x1xf32>
    %47 = vector.broadcast %46 : vector<1x1xf32> to vector<1x128xf32>
    %48 = arith.addf %45, %47 : vector<1x128xf32>
    %49 = arith.negf %48 : vector<1x128xf32>
    %50 = math.exp %49 : vector<1x128xf32>
    %cst_36 = arith.constant 1.000000e+00 : f32
    %51 = vector.broadcast %cst_36 : f32 to vector<1x128xf32>
    %52 = arith.addf %51, %50 : vector<1x128xf32>
    %53 = arith.divf %51, %52 : vector<1x128xf32>
    %c0_37 = arith.constant 0 : index
    %c0_38 = arith.constant 0 : index
    %c0_39 = arith.constant 0 : index
    %54 = vector.load %arg11[%c0_37, %c0_38, %c0_39] : memref<1x1x128xf32, #tpu.memory_space<vmem>>, vector<1x1x128xf32>
    %55 = vector.shape_cast %54 : vector<1x1x128xf32> to vector<1x128xf32>
    %56 = vector.shape_cast %53 : vector<1x128xf32> to vector<1x1x128xf32>
    tpu.vector_store %arg11[%c0_37, %c0_38, %c0_39], %56 {strides = array<i32>} : memref<1x1x128xf32, #tpu.memory_space<vmem>>, vector<1x1x128xf32>,
    return
  }
  func.func @transform_0(%arg0: i32) -> (i32, i32, i32) {
    %c0_i32 = arith.constant 0 : i32
    %c0_i32_0 = arith.constant 0 : i32
    %c0_i32_1 = arith.constant 0 : i32
    return %arg0, %c0_i32, %c0_i32_0 : i32, i32, i32
  }
  func.func @transform_1(%arg0: i32) -> (i32, i32) {
    %c0_i32 = arith.constant 0 : i32
    %c0_i32_0 = arith.constant 0 : i32
    %c0_i32_1 = arith.constant 0 : i32
    return %c0_i32, %c0_i32_0 : i32, i32
  }
  func.func @transform_2(%arg0: i32) -> (i32, i32) {
    %c0_i32 = arith.constant 0 : i32
    %c0_i32_0 = arith.constant 0 : i32
    %c0_i32_1 = arith.constant 0 : i32
    return %c0_i32, %c0_i32_0 : i32, i32
  }
  func.func @transform_3(%arg0: i32) -> (i32, i32) {
    %c0_i32 = arith.constant 0 : i32
    %c0_i32_0 = arith.constant 0 : i32
    %c0_i32_1 = arith.constant 0 : i32
    return %c0_i32, %c0_i32_0 : i32, i32
  }
  func.func @transform_4(%arg0: i32) -> (i32, i32) {
    %c0_i32 = arith.constant 0 : i32
    %c0_i32_0 = arith.constant 0 : i32
    %c0_i32_1 = arith.constant 0 : i32
    return %c0_i32, %c0_i32_0 : i32, i32
  }
  func.func @transform_5(%arg0: i32) -> (i32, i32) {
    %c0_i32 = arith.constant 0 : i32
    %c0_i32_0 = arith.constant 0 : i32
    %c0_i32_1 = arith.constant 0 : i32
    return %c0_i32, %c0_i32_0 : i32, i32
  }
  func.func @transform_6(%arg0: i32) -> (i32, i32) {
    %c0_i32 = arith.constant 0 : i32
    %c0_i32_0 = arith.constant 0 : i32
    %c0_i32_1 = arith.constant 0 : i32
    return %c0_i32, %c0_i32_0 : i32, i32
  }
  func.func @transform_7(%arg0: i32) -> (i32, i32) {
    %c0_i32 = arith.constant 0 : i32
    %c0_i32_0 = arith.constant 0 : i32
    %c0_i32_1 = arith.constant 0 : i32
    return %c0_i32, %c0_i32_0 : i32, i32
  }
  func.func @transform_8(%arg0: i32) -> (i32, i32) {
    %c0_i32 = arith.constant 0 : i32
    %c0_i32_0 = arith.constant 0 : i32
    %c0_i32_1 = arith.constant 0 : i32
    return %c0_i32, %c0_i32_0 : i32, i32
  }
  func.func @transform_9(%arg0: i32) -> (i32, i32) {
    %c0_i32 = arith.constant 0 : i32
    %c0_i32_0 = arith.constant 0 : i32
    %c0_i32_1 = arith.constant 0 : i32
    return %c0_i32, %c0_i32_0 : i32, i32
  }
  func.func @transform_10(%arg0: i32) -> (i32, i32, i32) {
    %c0_i32 = arith.constant 0 : i32
    %c0_i32_0 = arith.constant 0 : i32
    %c0_i32_1 = arith.constant 0 : i32
    return %arg0, %c0_i32, %c0_i32_0 : i32, i32, i32
  }
}

</mosaic_0001>

<llo_original>
// kernel: tpu_custom_call.1
$region0: #{tpu_custom_call.1}
  #allocation0 [shape = 'u32[]', space=smem, size = 0x4, offset = 0x4, fixed_abs, tag = 'smem constant byte address 0x4 - core index']
  #allocation1 [shape = 'u32[144,128]{1,0:T(1,128)}', space=vmem, size = 0x12000, scoped, tag = 'internal scratch']
  #allocation2 [shape = 'f32[1,1]{1,0:T(1,128)S(1)}', space=vmem, size = 0x200, scoped, tag = 'scoped memory for tpu_custom_call.1']
  %s0 = inlined_call_operand.vmem [shape: f32[1,16,128], index: 0, kind: input, shape index: {}]
  %s1 = inlined_call_operand.vmem [shape: f32[128,128], index: 1, kind: input, shape index: {}]
  %s2 = inlined_call_operand.vmem [shape: f32[128,64], index: 2, kind: input, shape index: {}]
  %s3 = inlined_call_operand.vmem [shape: f32[128,1], index: 3, kind: input, shape index: {}]
  %s4 = inlined_call_operand.vmem [shape: f32[64,512], index: 4, kind: input, shape index: {}]
  %s5 = inlined_call_operand.vmem [shape: f32[64,1], index: 5, kind: input, shape index: {}]
  %s6 = inlined_call_operand.vmem [shape: f32[32,256], index: 6, kind: input, shape index: {}]
  %s7 = inlined_call_operand.vmem [shape: f32[32,1], index: 7, kind: input, shape index: {}]
  %s8 = inlined_call_operand.vmem [shape: f32[128,1], index: 8, kind: input, shape index: {}]
  %s9 = inlined_call_operand.<no memory space> [shape: f32[1,1], index: 9, kind: input, shape index: {}]
  %s10 = inlined_call_operand.hbm [shape: f32[1,1,128], index: 10, kind: output, shape index: {}]
  %s11 = sld [smem:[#allocation0]]
  $region50: #{tpu_custom_call.1} parent=0
    _
  %s13 = ssub.s32 1, %s11
  %s14 = scalar_select 0, %s13, %s11
  %v15 = vstv %s9
  %16 = vst [vmem:[#allocation2] sm:$0x1] %v15
  $region1: #{tpu_custom_call.1} parent=0
    #allocation3 [shape = 'u8[512]{0}', space=vmem, size = 0x400, scoped, tag = 'output window, operand 0, single buffered']
    #allocation4 [shape = 's32[1]{0}', space=sflag, size = 0x4, scoped, tag = 'scoped memory for tpu_custom_call.1']
    %17 = vsyncpa [#allocation4], 0
    // Predicated region
    $region2: #{tpu_custom_call.1} parent=1 // pred_check
      _
    $region3: #{tpu_custom_call.1} parent=1 // pred_check_branch
      %19 = sbr.rel (0) target = $region5
    $region4: #{tpu_custom_call.1} parent=1 // pred_region
      _
    $region5: #{tpu_custom_call.1} parent=1 // pred_fallthru
      _
    // Predicated region
    $region6: #{tpu_custom_call.1} parent=1 // pred_check
      _
    $region7: #{tpu_custom_call.1} parent=1 // pred_check_branch
      %21 = sbr.rel (0) target = $region9
    $region8: #{tpu_custom_call.1} parent=1 // pred_region
      _
    $region9: #{tpu_custom_call.1} parent=1 // pred_fallthru
      _
    // Predicated region
    $region10: #{tpu_custom_call.1} parent=1 // pred_check
      _
    $region11: #{tpu_custom_call.1} parent=1 // pred_check_branch
      %23 = sbr.rel (0) target = $region13
    $region12: #{tpu_custom_call.1} parent=1 // pred_region
      _
    $region13: #{tpu_custom_call.1} parent=1 // pred_fallthru
      _
    // Predicated region
    $region14: #{tpu_custom_call.1} parent=1 // pred_check
      _
    $region15: #{tpu_custom_call.1} parent=1 // pred_check_branch
      %25 = sbr.rel (0) target = $region17
    $region16: #{tpu_custom_call.1} parent=1 // pred_region
      _
    $region17: #{tpu_custom_call.1} parent=1 // pred_fallthru
      _
    // Predicated region
    $region18: #{tpu_custom_call.1} parent=1 // pred_check
      _
    $region19: #{tpu_custom_call.1} parent=1 // pred_check_branch
      %27 = sbr.rel (0) target = $region21
    $region20: #{tpu_custom_call.1} parent=1 // pred_region
      _
    $region21: #{tpu_custom_call.1} parent=1 // pred_fallthru
      _
    // Predicated region
    $region22: #{tpu_custom_call.1} parent=1 // pred_check
      _
    $region23: #{tpu_custom_call.1} parent=1 // pred_check_branch
      %29 = sbr.rel (0) target = $region25
    $region24: #{tpu_custom_call.1} parent=1 // pred_region
      _
    $region25: #{tpu_custom_call.1} parent=1 // pred_fallthru
      _
    // Predicated region
    $region26: #{tpu_custom_call.1} parent=1 // pred_check
      _
    $region27: #{tpu_custom_call.1} parent=1 // pred_check_branch
      %31 = sbr.rel (0) target = $region29
    $region28: #{tpu_custom_call.1} parent=1 // pred_region
      _
    $region29: #{tpu_custom_call.1} parent=1 // pred_fallthru
      _
    // Predicated region
    $region30: #{tpu_custom_call.1} parent=1 // pred_check
      _
    $region31: #{tpu_custom_call.1} parent=1 // pred_check_branch
      %33 = sbr.rel (0) target = $region33
    $region32: #{tpu_custom_call.1} parent=1 // pred_region
      _
    $region33: #{tpu_custom_call.1} parent=1 // pred_fallthru
      _
    // Predicated region
    $region34: #{tpu_custom_call.1} parent=1 // pred_check
      _
    $region35: #{tpu_custom_call.1} parent=1 // pred_check_branch
      %35 = sbr.rel (0) target = $region37
    $region36: #{tpu_custom_call.1} parent=1 // pred_region
      _
    $region37: #{tpu_custom_call.1} parent=1 // pred_fallthru
      _
    // Predicated region
    $region38: #{tpu_custom_call.1} parent=1 // pred_check
      _
    $region39: #{tpu_custom_call.1} parent=1 // pred_check_branch
      %37 = sbr.rel (0) target = $region41
    $region40: #{tpu_custom_call.1} parent=1 // pred_region
      _
    $region41: #{tpu_custom_call.1} parent=1 // pred_fallthru
      _
    %v38 = vld [vmem:[%s1] sm:$0xff]
    %v39 = vld [vmem:[%s1 + $0x8] sm:$0xff]
    %v40 = vld [vmem:[%s1 + $0x10] sm:$0xff]
    %v41 = vld [vmem:[%s1 + $0x18] sm:$0xff]
    %v42 = vld [vmem:[%s1 + $0x20] sm:$0xff]
    %v43 = vld [vmem:[%s1 + $0x28] sm:$0xff]
    %v44 = vld [vmem:[%s1 + $0x30] sm:$0xff]
    %v45 = vld [vmem:[%s1 + $0x38] sm:$0xff]
    %v46 = vld [vmem:[%s1 + $0x40] sm:$0xff]
    %v47 = vld [vmem:[%s1 + $0x48] sm:$0xff]
    %v48 = vld [vmem:[%s1 + $0x50] sm:$0xff]
    %v49 = vld [vmem:[%s1 + $0x58] sm:$0xff]
    %v50 = vld [vmem:[%s1 + $0x60] sm:$0xff]
    %v51 = vld [vmem:[%s1 + $0x68] sm:$0xff]
    %v52 = vld [vmem:[%s1 + $0x70] sm:$0xff]
    %v53 = vld [vmem:[%s1 + $0x78] sm:$0xff]
    %v54 = vld [vmem:[%s0] sm:$0xff]
    %v55 = vld [vmem:[%s0 + $0x8] sm:$0xff]
    %v56 = vld [vmem:[%s2] sm:$0xff]
    %v57 = vld [vmem:[%s2 + $0x8] sm:$0xff]
    %v58 = vld [vmem:[%s2 + $0x10] sm:$0xff]
    %v59 = vld [vmem:[%s2 + $0x18] sm:$0xff]
    %v60 = vld [vmem:[%s2 + $0x20] sm:$0xff]
    %v61 = vld [vmem:[%s2 + $0x28] sm:$0xff]
    %v62 = vld [vmem:[%s2 + $0x30] sm:$0xff]
    %v63 = vld [vmem:[%s2 + $0x38] sm:$0xff]
    %v64 = vld [vmem:[%s2 + $0x40] sm:$0xff]
    %v65 = vld [vmem:[%s2 + $0x48] sm:$0xff]
    %v66 = vld [vmem:[%s2 + $0x50] sm:$0xff]
    %v67 = vld [vmem:[%s2 + $0x58] sm:$0xff]
    %v68 = vld [vmem:[%s2 + $0x60] sm:$0xff]
    %v69 = vld [vmem:[%s2 + $0x68] sm:$0xff]
    %v70 = vld [vmem:[%s2 + $0x70] sm:$0xff]
    %v71 = vld [vmem:[%s2 + $0x78] sm:$0xff]
    %72 = vrot.lane.b32.xlu0 %v54, 127
    %v73 = vpop.permute.xlu0 %72
    %74 = vrot.lane.b32.xlu0 %v55, 127
    %v75 = vpop.permute.xlu0 %74
    %76 = vrot.lane.b32.xlu0 %v54, 126
    %v77 = vpop.permute.xlu0 %76
    %78 = vrot.lane.b32.xlu0 %v55, 126
    %v79 = vpop.permute.xlu0 %78
    %80 = vrot.lane.b32.xlu0 %v54, 125
    %v81 = vpop.permute.xlu0 %80
    %82 = vrot.lane.b32.xlu0 %v55, 125
    %v83 = vpop.permute.xlu0 %82
    %v84 = vld [vmem:[%s3] sm:$0xff]
    %v85 = vld [vmem:[%s3 + $0x8] sm:$0xff]
    %v86 = vld [vmem:[%s3 + $0x10] sm:$0xff]
    %v87 = vld [vmem:[%s3 + $0x18] sm:$0xff]
    %v88 = vld [vmem:[%s3 + $0x20] sm:$0xff]
    %v89 = vld [vmem:[%s3 + $0x28] sm:$0xff]
    %v90 = vld [vmem:[%s3 + $0x30] sm:$0xff]
    %v91 = vld [vmem:[%s3 + $0x38] sm:$0xff]
    %v92 = vld [vmem:[%s3 + $0x40] sm:$0xff]
    %v93 = vld [vmem:[%s3 + $0x48] sm:$0xff]
    %v94 = vld [vmem:[%s3 + $0x50] sm:$0xff]
    %v95 = vld [vmem:[%s3 + $0x58] sm:$0xff]
    %v96 = vld [vmem:[%s3 + $0x60] sm:$0xff]
    %v97 = vld [vmem:[%s3 + $0x68] sm:$0xff]
    %v98 = vld [vmem:[%s3 + $0x70] sm:$0xff]
    %v99 = vld [vmem:[%s3 + $0x78] sm:$0xff]
    %101 = vset.pattern.permute.xlu0 0
    %102 = vperm.xlu0 %101, %v84
    %v103 = vpop.permute.xlu0 %102
    %106 = vset.pattern.permute.xlu0 0
    %107 = vperm.xlu0 %106, %v85
    %v108 = vpop.permute.xlu0 %107
    %111 = vset.pattern.permute.xlu0 0
    %112 = vperm.xlu0 %111, %v86
    %v113 = vpop.permute.xlu0 %112
    %116 = vset.pattern.permute.xlu0 0
    %117 = vperm.xlu0 %116, %v87
    %v118 = vpop.permute.xlu0 %117
    %121 = vset.pattern.permute.xlu0 0
    %122 = vperm.xlu0 %121, %v88
    %v123 = vpop.permute.xlu0 %122
    %126 = vset.pattern.permute.xlu0 0
    %127 = vperm.xlu0 %126, %v89
    %v128 = vpop.permute.xlu0 %127
    %131 = vset.pattern.permute.xlu0 0
    %132 = vperm.xlu0 %131, %v90
    %v133 = vpop.permute.xlu0 %132
    %136 = vset.pattern.permute.xlu0 0
    %137 = vperm.xlu0 %136, %v91
    %v138 = vpop.permute.xlu0 %137
    %141 = vset.pattern.permute.xlu0 0
    %142 = vperm.xlu0 %141, %v92
    %v143 = vpop.permute.xlu0 %142
    %146 = vset.pattern.permute.xlu0 0
    %147 = vperm.xlu0 %146, %v93
    %v148 = vpop.permute.xlu0 %147
    %151 = vset.pattern.permute.xlu0 0
    %152 = vperm.xlu0 %151, %v94
    %v153 = vpop.permute.xlu0 %152
    %156 = vset.pattern.permute.xlu0 0
    %157 = vperm.xlu0 %156, %v95
    %v158 = vpop.permute.xlu0 %157
    %161 = vset.pattern.permute.xlu0 0
    %162 = vperm.xlu0 %161, %v96
    %v163 = vpop.permute.xlu0 %162
    %166 = vset.pattern.permute.xlu0 0
    %167 = vperm.xlu0 %166, %v97
    %v168 = vpop.permute.xlu0 %167
    %171 = vset.pattern.permute.xlu0 0
    %172 = vperm.xlu0 %171, %v98
    %v173 = vpop.permute.xlu0 %172
    %176 = vset.pattern.permute.xlu0 0
    %177 = vperm.xlu0 %176, %v99
    %v178 = vpop.permute.xlu0 %177
    %vm180 = vcmask 523264
    %v182 = vsel %vm180, %v56, 0
    %v185 = vsel %vm180, %v57, 0
    %v188 = vsel %vm180, %v58, 0
    %v191 = vsel %vm180, %v59, 0
    %v194 = vsel %vm180, %v60, 0
    %v197 = vsel %vm180, %v61, 0
    %v200 = vsel %vm180, %v62, 0
    %v203 = vsel %vm180, %v63, 0
    %v206 = vsel %vm180, %v64, 0
    %v209 = vsel %vm180, %v65, 0
    %v212 = vsel %vm180, %v66, 0
    %v215 = vsel %vm180, %v67, 0
    %v218 = vsel %vm180, %v68, 0
    %v221 = vsel %vm180, %v69, 0
    %v224 = vsel %vm180, %v70, 0
    %v227 = vsel %vm180, %v71, 0
    %229 = vmatprep.subr.mxu0 0.0
    %230 = vmatpush1.msra.mxu0 0.0
    %231 = vmatprep.subr.mxu0 0.0
    %232 = vmatpush1.msra.mxu0 0.0
    %233 = vmatprep.subr.mxu0 0.0
    %234 = vmatpush1.msra.mxu0 0.0
    %235 = vmatprep.subr.mxu0 0.0
    %236 = vmatpush1.msra.mxu0 0.0
    %237 = vmatprep.subr.mxu0 0.0
    %238 = vmatpush1.msra.mxu0 0.0
    %239 = vmatprep.subr.mxu0 0.0
    %240 = vmatpush1.msra.mxu0 0.0
    %241 = vmatprep.subr.mxu0 0.0
    %242 = vmatpush1.msra.mxu0 0.0
    %243 = vmatprep.subr.mxu0 0.0
    %244 = vmatpush1.msra.mxu0 0.0
    %245 = vmatprep.subr.mxu0 0.0
    %246 = vmatpush1.msra.mxu0 %v83
    %247 = vmatprep.subr.mxu0 0.0
    %248 = vmatpush1.msra.mxu0 %v81
    %249 = vmatprep.subr.mxu0 0.0
    %250 = vmatpush1.msra.mxu0 %v79
    %251 = vmatprep.subr.mxu0 0.0
    %252 = vmatpush1.msra.mxu0 %v77
    %253 = vmatprep.subr.mxu0 0.0
    %254 = vmatpush1.msra.mxu0 %v75
    %255 = vmatprep.subr.mxu0 0.0
    %256 = vmatpush1.msra.mxu0 %v73
    %257 = vmatprep.subr.mxu0 0.0
    %258 = vmatpush1.msra.mxu0 %v55
    %259 = vmatprep.subr.mxu0 0.0
    %260 = vmatpush1.msra.mxu0 %v54
    %261 = vmatprep.subr.mxu0 0.0
    %262 = vmatpush2.msra.mxu0 0.0
    %263 = vmatprep.subr.mxu0 0.0
    %264 = vmatpush2.msra.mxu0 0.0
    %265 = vmatprep.subr.mxu0 0.0
    %266 = vmatpush2.msra.mxu0 0.0
    %267 = vmatprep.subr.mxu0 0.0
    %268 = vmatpush2.msra.mxu0 0.0
    %269 = vmatprep.subr.mxu0 0.0
    %270 = vmatpush2.msra.mxu0 0.0
    %271 = vmatprep.subr.mxu0 0.0
    %272 = vmatpush2.msra.mxu0 0.0
    %273 = vmatprep.subr.mxu0 0.0
    %274 = vmatpush2.msra.mxu0 0.0
    %275 = vmatprep.subr.mxu0 0.0
    %276 = vmatpush2.msra.mxu0 0.0
    %277 = vmatprep.subr.mxu0 0.0
    %278 = vmatpush2.msra.mxu0 0.0
    %279 = vmatprep.subr.mxu0 0.0
    %280 = vmatpush2.msra.mxu0 0.0
    %281 = vmatprep.subr.mxu0 0.0
    %282 = vmatpush2.msra.mxu0 0.0
    %283 = vmatprep.subr.mxu0 0.0
    %284 = vmatpush2.msra.mxu0 0.0
    %285 = vmatprep.subr.mxu0 0.0
    %286 = vmatpush2.msra.mxu0 0.0
    %287 = vmatprep.subr.mxu0 0.0
    %288 = vmatpush2.msra.mxu0 0.0
    %289 = vmatprep.subr.mxu0 0.0
    %290 = vmatpush2.msra.mxu0 0.0
    %291 = vmatprep.subr.mxu0 0.0
    %292 = vmatpush2.msra.mxu0 0.0
    %293 = vmatprep.mubr.f32.mxu0 0.0
    %294 = vmatmul.mubr.f32.gmra.mxu0 %v182
    %v295 = vpop.f32.mrf.mxu0
    %v296 = vadd.f32 %v103, %v295
    %v297 = vpop.f32.mrf.mxu0
    %298 = vmatprep.mubr.f32.mxu0 0.0
    %299 = vmatmul.mubr.f32.gmra.mxu0 %v185
    %v300 = vpop.f32.mrf.mxu0
    %v301 = vadd.f32 %v108, %v300
    %v302 = vpop.f32.mrf.mxu0
    %303 = vmatprep.mubr.f32.mxu0 0.0
    %304 = vmatmul.mubr.f32.gmra.mxu0 %v188
    %v305 = vpop.f32.mrf.mxu0
    %v306 = vadd.f32 %v113, %v305
    %v307 = vpop.f32.mrf.mxu0
    %308 = vmatprep.mubr.f32.mxu0 0.0
    %309 = vmatmul.mubr.f32.gmra.mxu0 %v191
    %v310 = vpop.f32.mrf.mxu0
    %v311 = vadd.f32 %v118, %v310
    %v312 = vpop.f32.mrf.mxu0
    %313 = vmatprep.mubr.f32.mxu0 0.0
    %314 = vmatmul.mubr.f32.gmra.mxu0 %v194
    %v315 = vpop.f32.mrf.mxu0
    %v316 = vadd.f32 %v123, %v315
    %v317 = vpop.f32.mrf.mxu0
    %318 = vmatprep.mubr.f32.mxu0 0.0
    %319 = vmatmul.mubr.f32.gmra.mxu0 %v197
    %v320 = vpop.f32.mrf.mxu0
    %v321 = vadd.f32 %v128, %v320
    %v322 = vpop.f32.mrf.mxu0
    %323 = vmatprep.mubr.f32.mxu0 0.0
    %324 = vmatmul.mubr.f32.gmra.mxu0 %v200
    %v325 = vpop.f32.mrf.mxu0
    %v326 = vadd.f32 %v133, %v325
    %v327 = vpop.f32.mrf.mxu0
    %328 = vmatprep.mubr.f32.mxu0 0.0
    %329 = vmatmul.mubr.f32.gmra.mxu0 %v203
    %v330 = vpop.f32.mrf.mxu0
    %v331 = vadd.f32 %v138, %v330
    %v332 = vpop.f32.mrf.mxu0
    %333 = vmatprep.mubr.f32.mxu0 0.0
    %334 = vmatmul.mubr.f32.gmra.mxu0 %v206
    %v335 = vpop.f32.mrf.mxu0
    %v336 = vadd.f32 %v143, %v335
    %v337 = vpop.f32.mrf.mxu0
    %338 = vmatprep.mubr.f32.mxu0 0.0
    %339 = vmatmul.mubr.f32.gmra.mxu0 %v209
    %v340 = vpop.f32.mrf.mxu0
    %v341 = vadd.f32 %v148, %v340
    %v342 = vpop.f32.mrf.mxu0
    %343 = vmatprep.mubr.f32.mxu0 0.0
    %344 = vmatmul.mubr.f32.gmra.mxu0 %v212
    %v345 = vpop.f32.mrf.mxu0
    %v346 = vadd.f32 %v153, %v345
    %v347 = vpop.f32.mrf.mxu0
    %348 = vmatprep.mubr.f32.mxu0 0.0
    %349 = vmatmul.mubr.f32.gmra.mxu0 %v215
    %v350 = vpop.f32.mrf.mxu0
    %v351 = vadd.f32 %v158, %v350
    %v352 = vpop.f32.mrf.mxu0
    %353 = vmatprep.mubr.f32.mxu0 0.0
    %354 = vmatmul.mubr.f32.gmra.mxu0 %v218
    %v355 = vpop.f32.mrf.mxu0
    %v356 = vadd.f32 %v163, %v355
    %v357 = vpop.f32.mrf.mxu0
    %358 = vmatprep.mubr.f32.mxu0 0.0
    %359 = vmatmul.mubr.f32.gmra.mxu0 %v221
    %v360 = vpop.f32.mrf.mxu0
    %v361 = vadd.f32 %v168, %v360
    %v362 = vpop.f32.mrf.mxu0
    %363 = vmatprep.mubr.f32.mxu0 0.0
    %364 = vmatmul.mubr.f32.gmra.mxu0 %v224
    %v365 = vpop.f32.mrf.mxu0
    %v366 = vadd.f32 %v173, %v365
    %v367 = vpop.f32.mrf.mxu0
    %368 = vmatprep.mubr.f32.mxu0 0.0
    %369 = vmatmul.mubr.f32.gmra.mxu0 %v227
    %v370 = vpop.f32.mrf.mxu0
    %v371 = vadd.f32 %v178, %v370
    %v372 = vpop.f32.mrf.mxu0
    %373 = vdwg.mxu0
    %v374 = vmax.f32 %v296, 0.0
    %v375 = vmax.f32 %v301, 0.0
    %v376 = vmax.f32 %v306, 0.0
    %v377 = vmax.f32 %v311, 0.0
    %v378 = vmax.f32 %v316, 0.0
    %v379 = vmax.f32 %v321, 0.0
    %v380 = vmax.f32 %v326, 0.0
    %v381 = vmax.f32 %v331, 0.0
    %v382 = vmax.f32 %v336, 0.0
    %v383 = vmax.f32 %v341, 0.0
    %v384 = vmax.f32 %v346, 0.0
    %v385 = vmax.f32 %v351, 0.0
    %v386 = vmax.f32 %v356, 0.0
    %v387 = vmax.f32 %v361, 0.0
    %v388 = vmax.f32 %v366, 0.0
    %v389 = vmax.f32 %v371, 0.0
    %v390 = vld [vmem:[%s4] sm:$0xff]
    %v391 = vld [vmem:[%s4 + $0x8] sm:$0xff]
    %v392 = vld [vmem:[%s4 + $0x10] sm:$0xff]
    %v393 = vld [vmem:[%s4 + $0x18] sm:$0xff]
    %v394 = vld [vmem:[%s4 + $0x20] sm:$0xff]
    %v395 = vld [vmem:[%s4 + $0x28] sm:$0xff]
    %v396 = vld [vmem:[%s4 + $0x30] sm:$0xff]
    %v397 = vld [vmem:[%s4 + $0x38] sm:$0xff]
    %v398 = vld [vmem:[%s4 + $0x40] sm:$0xff]
    %v399 = vld [vmem:[%s4 + $0x48] sm:$0xff]
    %v400 = vld [vmem:[%s4 + $0x50] sm:$0xff]
    %v401 = vld [vmem:[%s4 + $0x58] sm:$0xff]
    %v402 = vld [vmem:[%s4 + $0x60] sm:$0xff]
    %v403 = vld [vmem:[%s4 + $0x68] sm:$0xff]
    %v404 = vld [vmem:[%s4 + $0x70] sm:$0xff]
    %v405 = vld [vmem:[%s4 + $0x78] sm:$0xff]
    %v406 = vld [vmem:[%s4 + $0x80] sm:$0xff]
    %v407 = vld [vmem:[%s4 + $0x88] sm:$0xff]
    %v408 = vld [vmem:[%s4 + $0x90] sm:$0xff]
    %v409 = vld [vmem:[%s4 + $0x98] sm:$0xff]
    %v410 = vld [vmem:[%s4 + $0xa0] sm:$0xff]
    %v411 = vld [vmem:[%s4 + $0xa8] sm:$0xff]
    %v412 = vld [vmem:[%s4 + $0xb0] sm:$0xff]
    %v413 = vld [vmem:[%s4 + $0xb8] sm:$0xff]
    %v414 = vld [vmem:[%s4 + $0xc0] sm:$0xff]
    %v415 = vld [vmem:[%s4 + $0xc8] sm:$0xff]
    %v416 = vld [vmem:[%s4 + $0xd0] sm:$0xff]
    %v417 = vld [vmem:[%s4 + $0xd8] sm:$0xff]
    %v418 = vld [vmem:[%s4 + $0xe0] sm:$0xff]
    %v419 = vld [vmem:[%s4 + $0xe8] sm:$0xff]
    %v420 = vld [vmem:[%s4 + $0xf0] sm:$0xff]
    %v421 = vld [vmem:[%s4 + $0xf8] sm:$0xff]
    %422 = vrot.lane.b32.xlu0 %v374, 127
    %v423 = vpop.permute.xlu0 %422
    %424 = vrot.lane.b32.xlu0 %v375, 127
    %v425 = vpop.permute.xlu0 %424
    %426 = vrot.lane.b32.xlu0 %v376, 127
    %v427 = vpop.permute.xlu0 %426
    %428 = vrot.lane.b32.xlu0 %v377, 127
    %v429 = vpop.permute.xlu0 %428
    %430 = vrot.lane.b32.xlu0 %v378, 127
    %v431 = vpop.permute.xlu0 %430
    %432 = vrot.lane.b32.xlu0 %v379, 127
    %v433 = vpop.permute.xlu0 %432
    %434 = vrot.lane.b32.xlu0 %v380, 127
    %v435 = vpop.permute.xlu0 %434
    %436 = vrot.lane.b32.xlu0 %v381, 127
    %v437 = vpop.permute.xlu0 %436
    %438 = vrot.lane.b32.xlu0 %v382, 127
    %v439 = vpop.permute.xlu0 %438
    %440 = vrot.lane.b32.xlu0 %v383, 127
    %v441 = vpop.permute.xlu0 %440
    %442 = vrot.lane.b32.xlu0 %v384, 127
    %v443 = vpop.permute.xlu0 %442
    %444 = vrot.lane.b32.xlu0 %v385, 127
    %v445 = vpop.permute.xlu0 %444
    %446 = vrot.lane.b32.xlu0 %v386, 127
    %v447 = vpop.permute.xlu0 %446
    %448 = vrot.lane.b32.xlu0 %v387, 127
    %v449 = vpop.permute.xlu0 %448
    %450 = vrot.lane.b32.xlu0 %v388, 127
    %v451 = vpop.permute.xlu0 %450
    %452 = vrot.lane.b32.xlu0 %v389, 127
    %v453 = vpop.permute.xlu0 %452
    %454 = vrot.lane.b32.xlu0 %v374, 126
    %v455 = vpop.permute.xlu0 %454
    %456 = vrot.lane.b32.xlu0 %v375, 126
    %v457 = vpop.permute.xlu0 %456
    %458 = vrot.lane.b32.xlu0 %v376, 126
    %v459 = vpop.permute.xlu0 %458
    %460 = vrot.lane.b32.xlu0 %v377, 126
    %v461 = vpop.permute.xlu0 %460
    %462 = vrot.lane.b32.xlu0 %v378, 126
    %v463 = vpop.permute.xlu0 %462
    %464 = vrot.lane.b32.xlu0 %v379, 126
    %v465 = vpop.permute.xlu0 %464
    %466 = vrot.lane.b32.xlu0 %v380, 126
    %v467 = vpop.permute.xlu0 %466
    %468 = vrot.lane.b32.xlu0 %v381, 126
    %v469 = vpop.permute.xlu0 %468
    %470 = vrot.lane.b32.xlu0 %v382, 126
    %v471 = vpop.permute.xlu0 %470
    %472 = vrot.lane.b32.xlu0 %v383, 126
    %v473 = vpop.permute.xlu0 %472
    %474 = vrot.lane.b32.xlu0 %v384, 126
    %v475 = vpop.permute.xlu0 %474
    %476 = vrot.lane.b32.xlu0 %v385, 126
    %v477 = vpop.permute.xlu0 %476
    %478 = vrot.lane.b32.xlu0 %v386, 126
    %v479 = vpop.permute.xlu0 %478
    %480 = vrot.lane.b32.xlu0 %v387, 126
    %v481 = vpop.permute.xlu0 %480
    %482 = vrot.lane.b32.xlu0 %v388, 126
    %v483 = vpop.permute.xlu0 %482
    %484 = vrot.lane.b32.xlu0 %v389, 126
    %v485 = vpop.permute.xlu0 %484
    %486 = vrot.lane.b32.xlu0 %v374, 125
    %v487 = vpop.permute.xlu0 %486
    %488 = vrot.lane.b32.xlu0 %v375, 125
    %v489 = vpop.permute.xlu0 %488
    %490 = vrot.lane.b32.xlu0 %v376, 125
    %v491 = vpop.permute.xlu0 %490
    %492 = vrot.lane.b32.xlu0 %v377, 125
    %v493 = vpop.permute.xlu0 %492
    %494 = vrot.lane.b32.xlu0 %v378, 125
    %v495 = vpop.permute.xlu0 %494
    %496 = vrot.lane.b32.xlu0 %v379, 125
    %v497 = vpop.permute.xlu0 %496
    %498 = vrot.lane.b32.xlu0 %v380, 125
    %v499 = vpop.permute.xlu0 %498
    %500 = vrot.lane.b32.xlu0 %v381, 125
    %v501 = vpop.permute.xlu0 %500
    %502 = vrot.lane.b32.xlu0 %v382, 125
    %v503 = vpop.permute.xlu0 %502
    %504 = vrot.lane.b32.xlu0 %v383, 125
    %v505 = vpop.permute.xlu0 %504
    %506 = vrot.lane.b32.xlu0 %v384, 125
    %v507 = vpop.permute.xlu0 %506
    %508 = vrot.lane.b32.xlu0 %v385, 125
    %v509 = vpop.permute.xlu0 %508
    %510 = vrot.lane.b32.xlu0 %v386, 125
    %v511 = vpop.permute.xlu0 %510
    %512 = vrot.lane.b32.xlu0 %v387, 125
    %v513 = vpop.permute.xlu0 %512
    %514 = vrot.lane.b32.xlu0 %v388, 125
    %v515 = vpop.permute.xlu0 %514
    %516 = vrot.lane.b32.xlu0 %v389, 125
    %v517 = vpop.permute.xlu0 %516
    %v518 = vld [vmem:[%s5] sm:$0xff]
    %v519 = vld [vmem:[%s5 + $0x8] sm:$0xff]
    %v520 = vld [vmem:[%s5 + $0x10] sm:$0xff]
    %v521 = vld [vmem:[%s5 + $0x18] sm:$0xff]
    %v522 = vld [vmem:[%s5 + $0x20] sm:$0xff]
    %v523 = vld [vmem:[%s5 + $0x28] sm:$0xff]
    %v524 = vld [vmem:[%s5 + $0x30] sm:$0xff]
    %v525 = vld [vmem:[%s5 + $0x38] sm:$0xff]
    %527 = vset.pattern.permute.xlu0 0
    %528 = vperm.xlu0 %527, %v518
    %v529 = vpop.permute.xlu0 %528
    %532 = vset.pattern.permute.xlu0 0
    %533 = vperm.xlu0 %532, %v519
    %v534 = vpop.permute.xlu0 %533
    %537 = vset.pattern.permute.xlu0 0
    %538 = vperm.xlu0 %537, %v520
    %v539 = vpop.permute.xlu0 %538
    %542 = vset.pattern.permute.xlu0 0
    %543 = vperm.xlu0 %542, %v521
    %v544 = vpop.permute.xlu0 %543
    %547 = vset.pattern.permute.xlu0 0
    %548 = vperm.xlu0 %547, %v522
    %v549 = vpop.permute.xlu0 %548
    %552 = vset.pattern.permute.xlu0 0
    %553 = vperm.xlu0 %552, %v523
    %v554 = vpop.permute.xlu0 %553
    %557 = vset.pattern.permute.xlu0 0
    %558 = vperm.xlu0 %557, %v524
    %v559 = vpop.permute.xlu0 %558
    %562 = vset.pattern.permute.xlu0 0
    %563 = vperm.xlu0 %562, %v525
    %v564 = vpop.permute.xlu0 %563
    %566 = vmatprep.subr.mxu0 0.0
    %567 = vmatpush1.msra.mxu0 %v389
    %568 = vmatprep.subr.mxu0 0.0
    %569 = vmatpush1.msra.mxu0 %v388
    %570 = vmatprep.subr.mxu0 0.0
    %571 = vmatpush1.msra.mxu0 %v387
    %572 = vmatprep.subr.mxu0 0.0
    %573 = vmatpush1.msra.mxu0 %v386
    %574 = vmatprep.subr.mxu0 0.0
    %575 = vmatpush1.msra.mxu0 %v385
    %576 = vmatprep.subr.mxu0 0.0
    %577 = vmatpush1.msra.mxu0 %v384
    %578 = vmatprep.subr.mxu0 0.0
    %579 = vmatpush1.msra.mxu0 %v383
    %580 = vmatprep.subr.mxu0 0.0
    %581 = vmatpush1.msra.mxu0 %v382
    %582 = vmatprep.subr.mxu0 0.0
    %583 = vmatpush1.msra.mxu0 %v381
    %584 = vmatprep.subr.mxu0 0.0
    %585 = vmatpush1.msra.mxu0 %v380
    %586 = vmatprep.subr.mxu0 0.0
    %587 = vmatpush1.msra.mxu0 %v379
    %588 = vmatprep.subr.mxu0 0.0
    %589 = vmatpush1.msra.mxu0 %v378
    %590 = vmatprep.subr.mxu0 0.0
    %591 = vmatpush1.msra.mxu0 %v377
    %592 = vmatprep.subr.mxu0 0.0
    %593 = vmatpush1.msra.mxu0 %v376
    %594 = vmatprep.subr.mxu0 0.0
    %595 = vmatpush1.msra.mxu0 %v375
    %596 = vmatprep.subr.mxu0 0.0
    %597 = vmatpush1.msra.mxu0 %v374
    %598 = vmatprep.subr.mxu0 0.0
    %599 = vmatpush2.msra.mxu0 %v453
    %600 = vmatprep.subr.mxu0 0.0
    %601 = vmatpush2.msra.mxu0 %v451
    %602 = vmatprep.subr.mxu0 0.0
    %603 = vmatpush2.msra.mxu0 %v449
    %604 = vmatprep.subr.mxu0 0.0
    %605 = vmatpush2.msra.mxu0 %v447
    %606 = vmatprep.subr.mxu0 0.0
    %607 = vmatpush2.msra.mxu0 %v445
    %608 = vmatprep.subr.mxu0 0.0
    %609 = vmatpush2.msra.mxu0 %v443
    %610 = vmatprep.subr.mxu0 0.0
    %611 = vmatpush2.msra.mxu0 %v441
    %612 = vmatprep.subr.mxu0 0.0
    %613 = vmatpush2.msra.mxu0 %v439
    %614 = vmatprep.subr.mxu0 0.0
    %615 = vmatpush2.msra.mxu0 %v437
    %616 = vmatprep.subr.mxu0 0.0
    %617 = vmatpush2.msra.mxu0 %v435
    %618 = vmatprep.subr.mxu0 0.0
    %619 = vmatpush2.msra.mxu0 %v433
    %620 = vmatprep.subr.mxu0 0.0
    %621 = vmatpush2.msra.mxu0 %v431
    %622 = vmatprep.subr.mxu0 0.0
    %623 = vmatpush2.msra.mxu0 %v429
    %624 = vmatprep.subr.mxu0 0.0
    %625 = vmatpush2.msra.mxu0 %v427
    %626 = vmatprep.subr.mxu0 0.0
    %627 = vmatpush2.msra.mxu0 %v425
    %628 = vmatprep.subr.mxu0 0.0
    %629 = vmatpush2.msra.mxu0 %v423
    %630 = vmatprep.mubr.f32.mxu0 %v391
    %631 = vmatmul.mubr.f32.gmra.mxu0 %v390
    %v632 = vpop.f32.mrf.mxu0
    %v633 = vadd.f32 %v529, %v632
    %v634 = vpop.f32.mrf.mxu0
    %635 = vmatprep.mubr.f32.mxu0 %v395
    %636 = vmatmul.mubr.f32.gmra.mxu0 %v394
    %v637 = vpop.f32.mrf.mxu0
    %v638 = vadd.f32 %v534, %v637
    %v639 = vpop.f32.mrf.mxu0
    %640 = vmatprep.mubr.f32.mxu0 %v399
    %641 = vmatmul.mubr.f32.gmra.mxu0 %v398
    %v642 = vpop.f32.mrf.mxu0
    %v643 = vadd.f32 %v539, %v642
    %v644 = vpop.f32.mrf.mxu0
    %645 = vmatprep.mubr.f32.mxu0 %v403
    %646 = vmatmul.mubr.f32.gmra.mxu0 %v402
    %v647 = vpop.f32.mrf.mxu0
    %v648 = vadd.f32 %v544, %v647
    %v649 = vpop.f32.mrf.mxu0
    %650 = vmatprep.mubr.f32.mxu0 %v407
    %651 = vmatmul.mubr.f32.gmra.mxu0 %v406
    %v652 = vpop.f32.mrf.mxu0
    %v653 = vadd.f32 %v549, %v652
    %v654 = vpop.f32.mrf.mxu0
    %655 = vmatprep.mubr.f32.mxu0 %v411
    %656 = vmatmul.mubr.f32.gmra.mxu0 %v410
    %v657 = vpop.f32.mrf.mxu0
    %v658 = vadd.f32 %v554, %v657
    %v659 = vpop.f32.mrf.mxu0
    %660 = vmatprep.mubr.f32.mxu0 %v415
    %661 = vmatmul.mubr.f32.gmra.mxu0 %v414
    %v662 = vpop.f32.mrf.mxu0
    %v663 = vadd.f32 %v559, %v662
    %v664 = vpop.f32.mrf.mxu0
    %665 = vmatprep.mubr.f32.mxu0 %v419
    %666 = vmatmul.mubr.f32.gmra.mxu0 %v418
    %v667 = vpop.f32.mrf.mxu0
    %v668 = vadd.f32 %v564, %v667
    %v669 = vpop.f32.mrf.mxu0
    %670 = vdwg.mxu0
    %671 = vmatprep.subr.mxu0 0.0
    %672 = vmatpush1.msra.mxu0 %v485
    %673 = vmatprep.subr.mxu0 0.0
    %674 = vmatpush1.msra.mxu0 %v483
    %675 = vmatprep.subr.mxu0 0.0
    %676 = vmatpush1.msra.mxu0 %v481
    %677 = vmatprep.subr.mxu0 0.0
    %678 = vmatpush1.msra.mxu0 %v479
    %679 = vmatprep.subr.mxu0 0.0
    %680 = vmatpush1.msra.mxu0 %v477
    %681 = vmatprep.subr.mxu0 0.0
    %682 = vmatpush1.msra.mxu0 %v475
    %683 = vmatprep.subr.mxu0 0.0
    %684 = vmatpush1.msra.mxu0 %v473
    %685 = vmatprep.subr.mxu0 0.0
    %686 = vmatpush1.msra.mxu0 %v471
    %687 = vmatprep.subr.mxu0 0.0
    %688 = vmatpush1.msra.mxu0 %v469
    %689 = vmatprep.subr.mxu0 0.0
    %690 = vmatpush1.msra.mxu0 %v467
    %691 = vmatprep.subr.mxu0 0.0
    %692 = vmatpush1.msra.mxu0 %v465
    %693 = vmatprep.subr.mxu0 0.0
    %694 = vmatpush1.msra.mxu0 %v463
    %695 = vmatprep.subr.mxu0 0.0
    %696 = vmatpush1.msra.mxu0 %v461
    %697 = vmatprep.subr.mxu0 0.0
    %698 = vmatpush1.msra.mxu0 %v459
    %699 = vmatprep.subr.mxu0 0.0
    %700 = vmatpush1.msra.mxu0 %v457
    %701 = vmatprep.subr.mxu0 0.0
    %702 = vmatpush1.msra.mxu0 %v455
    %703 = vmatprep.subr.mxu0 0.0
    %704 = vmatpush2.msra.mxu0 %v517
    %705 = vmatprep.subr.mxu0 0.0
    %706 = vmatpush2.msra.mxu0 %v515
    %707 = vmatprep.subr.mxu0 0.0
    %708 = vmatpush2.msra.mxu0 %v513
    %709 = vmatprep.subr.mxu0 0.0
    %710 = vmatpush2.msra.mxu0 %v511
    %711 = vmatprep.subr.mxu0 0.0
    %712 = vmatpush2.msra.mxu0 %v509
    %713 = vmatprep.subr.mxu0 0.0
    %714 = vmatpush2.msra.mxu0 %v507
    %715 = vmatprep.subr.mxu0 0.0
    %716 = vmatpush2.msra.mxu0 %v505
    %717 = vmatprep.subr.mxu0 0.0
    %718 = vmatpush2.msra.mxu0 %v503
    %719 = vmatprep.subr.mxu0 0.0
    %720 = vmatpush2.msra.mxu0 %v501
    %721 = vmatprep.subr.mxu0 0.0
    %722 = vmatpush2.msra.mxu0 %v499
    %723 = vmatprep.subr.mxu0 0.0
    %724 = vmatpush2.msra.mxu0 %v497
    %725 = vmatprep.subr.mxu0 0.0
    %726 = vmatpush2.msra.mxu0 %v495
    %727 = vmatprep.subr.mxu0 0.0
    %728 = vmatpush2.msra.mxu0 %v493
    %729 = vmatprep.subr.mxu0 0.0
    %730 = vmatpush2.msra.mxu0 %v491
    %731 = vmatprep.subr.mxu0 0.0
    %732 = vmatpush2.msra.mxu0 %v489
    %733 = vmatprep.subr.mxu0 0.0
    %734 = vmatpush2.msra.mxu0 %v487
    %735 = vmatprep.mubr.f32.mxu0 %v393
    %736 = vmatmul.mubr.f32.gmra.mxu0 %v392
    %v737 = vpop.f32.mrf.mxu0
    %v738 = vadd.f32 %v633, %v737
    %v739 = vpop.f32.mrf.mxu0
    %740 = vmatprep.mubr.f32.mxu0 %v397
    %741 = vmatmul.mubr.f32.gmra.mxu0 %v396
    %v742 = vpop.f32.mrf.mxu0
    %v743 = vadd.f32 %v638, %v742
    %v744 = vpop.f32.mrf.mxu0
    %745 = vmatprep.mubr.f32.mxu0 %v401
    %746 = vmatmul.mubr.f32.gmra.mxu0 %v400
    %v747 = vpop.f32.mrf.mxu0
    %v748 = vadd.f32 %v643, %v747
    %v749 = vpop.f32.mrf.mxu0
    %750 = vmatprep.mubr.f32.mxu0 %v405
    %751 = vmatmul.mubr.f32.gmra.mxu0 %v404
    %v752 = vpop.f32.mrf.mxu0
    %v753 = vadd.f32 %v648, %v752
    %v754 = vpop.f32.mrf.mxu0
    %755 = vmatprep.mubr.f32.mxu0 %v409
    %756 = vmatmul.mubr.f32.gmra.mxu0 %v408
    %v757 = vpop.f32.mrf.mxu0
    %v758 = vadd.f32 %v653, %v757
    %v759 = vpop.f32.mrf.mxu0
    %760 = vmatprep.mubr.f32.mxu0 %v413
    %761 = vmatmul.mubr.f32.gmra.mxu0 %v412
    %v762 = vpop.f32.mrf.mxu0
    %v763 = vadd.f32 %v658, %v762
    %v764 = vpop.f32.mrf.mxu0
    %765 = vmatprep.mubr.f32.mxu0 %v417
    %766 = vmatmul.mubr.f32.gmra.mxu0 %v416
    %v767 = vpop.f32.mrf.mxu0
    %v768 = vadd.f32 %v663, %v767
    %v769 = vpop.f32.mrf.mxu0
    %770 = vmatprep.mubr.f32.mxu0 %v421
    %771 = vmatmul.mubr.f32.gmra.mxu0 %v420
    %v772 = vpop.f32.mrf.mxu0
    %v773 = vadd.f32 %v668, %v772
    %v774 = vpop.f32.mrf.mxu0
    %775 = vdwg.mxu0
    %v776 = vmax.f32 %v738, 0.0
    %v777 = vmax.f32 %v743, 0.0
    %v778 = vmax.f32 %v748, 0.0
    %v779 = vmax.f32 %v753, 0.0
    %v780 = vmax.f32 %v758, 0.0
    %v781 = vmax.f32 %v763, 0.0
    %v782 = vmax.f32 %v768, 0.0
    %v783 = vmax.f32 %v773, 0.0
    %784 = vmatprep.subr.mxu0 0.0
    %785 = vmatpush1.msra.mxu0 %v53
    %786 = vmatprep.subr.mxu0 0.0
    %787 = vmatpush1.msra.mxu0 %v52
    %788 = vmatprep.subr.mxu0 0.0
    %789 = vmatpush1.msra.mxu0 %v51
    %790 = vmatprep.subr.mxu0 0.0
    %791 = vmatpush1.msra.mxu0 %v50
    %792 = vmatprep.subr.mxu0 0.0
    %793 = vmatpush1.msra.mxu0 %v49
    %794 = vmatprep.subr.mxu0 0.0
    %795 = vmatpush1.msra.mxu0 %v48
    %796 = vmatprep.subr.mxu0 0.0
    %797 = vmatpush1.msra.mxu0 %v47
    %798 = vmatprep.subr.mxu0 0.0
    %799 = vmatpush1.msra.mxu0 %v46
    %800 = vmatprep.subr.mxu0 0.0
    %801 = vmatpush1.msra.mxu0 %v45
    %802 = vmatprep.subr.mxu0 0.0
    %803 = vmatpush1.msra.mxu0 %v44
    %804 = vmatprep.subr.mxu0 0.0
    %805 = vmatpush1.msra.mxu0 %v43
    %806 = vmatprep.subr.mxu0 0.0
    %807 = vmatpush1.msra.mxu0 %v42
    %808 = vmatprep.subr.mxu0 0.0
    %809 = vmatpush1.msra.mxu0 %v41
    %810 = vmatprep.subr.mxu0 0.0
    %811 = vmatpush1.msra.mxu0 %v40
    %812 = vmatprep.subr.mxu0 0.0
    %813 = vmatpush1.msra.mxu0 %v39
    %814 = vmatprep.subr.mxu0 0.0
    %815 = vmatpush1.msra.mxu0 %v38
    %816 = vmatprep.subr.mxu0 0.0
    %817 = vmatpush2.msra.mxu0 0.0
    %818 = vmatprep.subr.mxu0 0.0
    %819 = vmatpush2.msra.mxu0 0.0
    %820 = vmatprep.subr.mxu0 0.0
    %821 = vmatpush2.msra.mxu0 0.0
    %822 = vmatprep.subr.mxu0 0.0
    %823 = vmatpush2.msra.mxu0 0.0
    %824 = vmatprep.subr.mxu0 0.0
    %825 = vmatpush2.msra.mxu0 0.0
    %826 = vmatprep.subr.mxu0 0.0
    %827 = vmatpush2.msra.mxu0 0.0
    %828 = vmatprep.subr.mxu0 0.0
    %829 = vmatpush2.msra.mxu0 0.0
    %830 = vmatprep.subr.mxu0 0.0
    %831 = vmatpush2.msra.mxu0 0.0
    %832 = vmatprep.subr.mxu0 0.0
    %833 = vmatpush2.msra.mxu0 0.0
    %834 = vmatprep.subr.mxu0 0.0
    %835 = vmatpush2.msra.mxu0 0.0
    %836 = vmatprep.subr.mxu0 0.0
    %837 = vmatpush2.msra.mxu0 0.0
    %838 = vmatprep.subr.mxu0 0.0
    %839 = vmatpush2.msra.mxu0 0.0
    %840 = vmatprep.subr.mxu0 0.0
    %841 = vmatpush2.msra.mxu0 0.0
    %842 = vmatprep.subr.mxu0 0.0
    %843 = vmatpush2.msra.mxu0 0.0
    %844 = vmatprep.subr.mxu0 0.0
    %845 = vmatpush2.msra.mxu0 0.0
    %846 = vmatprep.subr.mxu0 0.0
    %847 = vmatpush2.msra.mxu0 0.0
    %848 = vmatprep.mubr.f32.mxu0 0.0
    %849 = vmatmul.mubr.f32.gmra.mxu0 %v776
    %v850 = vpop.f32.mrf.mxu0
    %v851 = vadd.f32 0.0, %v850
    %v852 = vpop.f32.mrf.mxu0
    %853 = vmatprep.mubr.f32.mxu0 0.0
    %854 = vmatmul.mubr.f32.gmra.mxu0 %v777
    %v855 = vpop.f32.mrf.mxu0
    %v856 = vadd.f32 0.0, %v855
    %v857 = vpop.f32.mrf.mxu0
    %858 = vmatprep.mubr.f32.mxu0 0.0
    %859 = vmatmul.mubr.f32.gmra.mxu0 %v778
    %v860 = vpop.f32.mrf.mxu0
    %v861 = vadd.f32 0.0, %v860
    %v862 = vpop.f32.mrf.mxu0
    %863 = vmatprep.mubr.f32.mxu0 0.0
    %864 = vmatmul.mubr.f32.gmra.mxu0 %v779
    %v865 = vpop.f32.mrf.mxu0
    %v866 = vadd.f32 0.0, %v865
    %v867 = vpop.f32.mrf.mxu0
    %868 = vmatprep.mubr.f32.mxu0 0.0
    %869 = vmatmul.mubr.f32.gmra.mxu0 %v780
    %v870 = vpop.f32.mrf.mxu0
    %v871 = vadd.f32 0.0, %v870
    %v872 = vpop.f32.mrf.mxu0
    %873 = vmatprep.mubr.f32.mxu0 0.0
    %874 = vmatmul.mubr.f32.gmra.mxu0 %v781
    %v875 = vpop.f32.mrf.mxu0
    %v876 = vadd.f32 0.0, %v875
    %v877 = vpop.f32.mrf.mxu0
    %878 = vmatprep.mubr.f32.mxu0 0.0
    %879 = vmatmul.mubr.f32.gmra.mxu0 %v782
    %v880 = vpop.f32.mrf.mxu0
    %v881 = vadd.f32 0.0, %v880
    %v882 = vpop.f32.mrf.mxu0
    %883 = vmatprep.mubr.f32.mxu0 0.0
    %884 = vmatmul.mubr.f32.gmra.mxu0 %v783
    %v885 = vpop.f32.mrf.mxu0
    %v886 = vadd.f32 0.0, %v885
    %v887 = vpop.f32.mrf.mxu0
    %888 = vdwg.mxu0
    %v889 = vld [vmem:[%s6] sm:$0xff]
    %v890 = vld [vmem:[%s6 + $0x8] sm:$0xff]
    %v891 = vld [vmem:[%s6 + $0x10] sm:$0xff]
    %v892 = vld [vmem:[%s6 + $0x18] sm:$0xff]
    %v893 = vld [vmem:[%s6 + $0x20] sm:$0xff]
    %v894 = vld [vmem:[%s6 + $0x28] sm:$0xff]
    %v895 = vld [vmem:[%s6 + $0x30] sm:$0xff]
    %v896 = vld [vmem:[%s6 + $0x38] sm:$0xff]
    %897 = vrot.lane.b32.xlu0 %v851, 127
    %v898 = vpop.permute.xlu0 %897
    %899 = vrot.lane.b32.xlu0 %v856, 127
    %v900 = vpop.permute.xlu0 %899
    %901 = vrot.lane.b32.xlu0 %v861, 127
    %v902 = vpop.permute.xlu0 %901
    %903 = vrot.lane.b32.xlu0 %v866, 127
    %v904 = vpop.permute.xlu0 %903
    %905 = vrot.lane.b32.xlu0 %v871, 127
    %v906 = vpop.permute.xlu0 %905
    %907 = vrot.lane.b32.xlu0 %v876, 127
    %v908 = vpop.permute.xlu0 %907
    %909 = vrot.lane.b32.xlu0 %v881, 127
    %v910 = vpop.permute.xlu0 %909
    %911 = vrot.lane.b32.xlu0 %v886, 127
    %v912 = vpop.permute.xlu0 %911
    %913 = vrot.lane.b32.xlu0 %v851, 126
    %v914 = vpop.permute.xlu0 %913
    %915 = vrot.lane.b32.xlu0 %v856, 126
    %v916 = vpop.permute.xlu0 %915
    %917 = vrot.lane.b32.xlu0 %v861, 126
    %v918 = vpop.permute.xlu0 %917
    %919 = vrot.lane.b32.xlu0 %v866, 126
    %v920 = vpop.permute.xlu0 %919
    %921 = vrot.lane.b32.xlu0 %v871, 126
    %v922 = vpop.permute.xlu0 %921
    %923 = vrot.lane.b32.xlu0 %v876, 126
    %v924 = vpop.permute.xlu0 %923
    %925 = vrot.lane.b32.xlu0 %v881, 126
    %v926 = vpop.permute.xlu0 %925
    %927 = vrot.lane.b32.xlu0 %v886, 126
    %v928 = vpop.permute.xlu0 %927
    %929 = vrot.lane.b32.xlu0 %v851, 125
    %v930 = vpop.permute.xlu0 %929
    %931 = vrot.lane.b32.xlu0 %v856, 125
    %v932 = vpop.permute.xlu0 %931
    %933 = vrot.lane.b32.xlu0 %v861, 125
    %v934 = vpop.permute.xlu0 %933
    %935 = vrot.lane.b32.xlu0 %v866, 125
    %v936 = vpop.permute.xlu0 %935
    %937 = vrot.lane.b32.xlu0 %v871, 125
    %v938 = vpop.permute.xlu0 %937
    %939 = vrot.lane.b32.xlu0 %v876, 125
    %v940 = vpop.permute.xlu0 %939
    %941 = vrot.lane.b32.xlu0 %v881, 125
    %v942 = vpop.permute.xlu0 %941
    %943 = vrot.lane.b32.xlu0 %v886, 125
    %v944 = vpop.permute.xlu0 %943
    %v945 = vld [vmem:[%s7] sm:$0xff]
    %v946 = vld [vmem:[%s7 + $0x8] sm:$0xff]
    %v947 = vld [vmem:[%s7 + $0x10] sm:$0xff]
    %v948 = vld [vmem:[%s7 + $0x18] sm:$0xff]
    %950 = vset.pattern.permute.xlu0 0
    %951 = vperm.xlu0 %950, %v945
    %v952 = vpop.permute.xlu0 %951
    %955 = vset.pattern.permute.xlu0 0
    %956 = vperm.xlu0 %955, %v946
    %v957 = vpop.permute.xlu0 %956
    %960 = vset.pattern.permute.xlu0 0
    %961 = vperm.xlu0 %960, %v947
    %v962 = vpop.permute.xlu0 %961
    %965 = vset.pattern.permute.xlu0 0
    %966 = vperm.xlu0 %965, %v948
    %v967 = vpop.permute.xlu0 %966
    %969 = vmatprep.subr.mxu0 0.0
    %970 = vmatpush1.msra.mxu0 %v912
    %971 = vmatprep.subr.mxu0 0.0
    %972 = vmatpush1.msra.mxu0 %v910
    %973 = vmatprep.subr.mxu0 0.0
    %974 = vmatpush1.msra.mxu0 %v908
    %975 = vmatprep.subr.mxu0 0.0
    %976 = vmatpush1.msra.mxu0 %v906
    %977 = vmatprep.subr.mxu0 0.0
    %978 = vmatpush1.msra.mxu0 %v904
    %979 = vmatprep.subr.mxu0 0.0
    %980 = vmatpush1.msra.mxu0 %v902
    %981 = vmatprep.subr.mxu0 0.0
    %982 = vmatpush1.msra.mxu0 %v900
    %983 = vmatprep.subr.mxu0 0.0
    %984 = vmatpush1.msra.mxu0 %v898
    %985 = vmatprep.subr.mxu0 0.0
    %986 = vmatpush1.msra.mxu0 %v886
    %987 = vmatprep.subr.mxu0 0.0
    %988 = vmatpush1.msra.mxu0 %v881
    %989 = vmatprep.subr.mxu0 0.0
    %990 = vmatpush1.msra.mxu0 %v876
    %991 = vmatprep.subr.mxu0 0.0
    %992 = vmatpush1.msra.mxu0 %v871
    %993 = vmatprep.subr.mxu0 0.0
    %994 = vmatpush1.msra.mxu0 %v866
    %995 = vmatprep.subr.mxu0 0.0
    %996 = vmatpush1.msra.mxu0 %v861
    %997 = vmatprep.subr.mxu0 0.0
    %998 = vmatpush1.msra.mxu0 %v856
    %999 = vmatprep.subr.mxu0 0.0
    %1000 = vmatpush1.msra.mxu0 %v851
    %1001 = vmatprep.subr.mxu0 0.0
    %1002 = vmatpush2.msra.mxu0 %v944
    %1003 = vmatprep.subr.mxu0 0.0
    %1004 = vmatpush2.msra.mxu0 %v942
    %1005 = vmatprep.subr.mxu0 0.0
    %1006 = vmatpush2.msra.mxu0 %v940
    %1007 = vmatprep.subr.mxu0 0.0
    %1008 = vmatpush2.msra.mxu0 %v938
    %1009 = vmatprep.subr.mxu0 0.0
    %1010 = vmatpush2.msra.mxu0 %v936
    %1011 = vmatprep.subr.mxu0 0.0
    %1012 = vmatpush2.msra.mxu0 %v934
    %1013 = vmatprep.subr.mxu0 0.0
    %1014 = vmatpush2.msra.mxu0 %v932
    %1015 = vmatprep.subr.mxu0 0.0
    %1016 = vmatpush2.msra.mxu0 %v930
    %1017 = vmatprep.subr.mxu0 0.0
    %1018 = vmatpush2.msra.mxu0 %v928
    %1019 = vmatprep.subr.mxu0 0.0
    %1020 = vmatpush2.msra.mxu0 %v926
    %1021 = vmatprep.subr.mxu0 0.0
    %1022 = vmatpush2.msra.mxu0 %v924
    %1023 = vmatprep.subr.mxu0 0.0
    %1024 = vmatpush2.msra.mxu0 %v922
    %1025 = vmatprep.subr.mxu0 0.0
    %1026 = vmatpush2.msra.mxu0 %v920
    %1027 = vmatprep.subr.mxu0 0.0
    %1028 = vmatpush2.msra.mxu0 %v918
    %1029 = vmatprep.subr.mxu0 0.0
    %1030 = vmatpush2.msra.mxu0 %v916
    %1031 = vmatprep.subr.mxu0 0.0
    %1032 = vmatpush2.msra.mxu0 %v914
    %1033 = vmatprep.mubr.f32.mxu0 %v890
    %1034 = vmatmul.mubr.f32.gmra.mxu0 %v889
    %v1035 = vpop.f32.mrf.mxu0
    %v1036 = vadd.f32 %v952, %v1035
    %v1037 = vpop.f32.mrf.mxu0
    %1038 = vmatprep.mubr.f32.mxu0 %v892
    %1039 = vmatmul.mubr.f32.gmra.mxu0 %v891
    %v1040 = vpop.f32.mrf.mxu0
    %v1041 = vadd.f32 %v957, %v1040
    %v1042 = vpop.f32.mrf.mxu0
    %1043 = vmatprep.mubr.f32.mxu0 %v894
    %1044 = vmatmul.mubr.f32.gmra.mxu0 %v893
    %v1045 = vpop.f32.mrf.mxu0
    %v1046 = vadd.f32 %v962, %v1045
    %v1047 = vpop.f32.mrf.mxu0
    %1048 = vmatprep.mubr.f32.mxu0 %v896
    %1049 = vmatmul.mubr.f32.gmra.mxu0 %v895
    %v1050 = vpop.f32.mrf.mxu0
    %v1051 = vadd.f32 %v967, %v1050
    %v1052 = vpop.f32.mrf.mxu0
    %1053 = vdwg.mxu0
    %v1054 = vmax.f32 %v1036, 0.0
    %v1055 = vmax.f32 %v1041, 0.0
    %v1056 = vmax.f32 %v1046, 0.0
    %v1057 = vmax.f32 %v1051, 0.0
    %v1058 = vld [vmem:[%s8] sm:$0xff]
    %v1059 = vld [vmem:[%s8 + $0x8] sm:$0xff]
    %v1060 = vld [vmem:[%s8 + $0x10] sm:$0xff]
    %v1061 = vld [vmem:[%s8 + $0x18] sm:$0xff]
    %v1062 = vld [vmem:[%s8 + $0x20] sm:$0xff]
    %v1063 = vld [vmem:[%s8 + $0x28] sm:$0xff]
    %v1064 = vld [vmem:[%s8 + $0x30] sm:$0xff]
    %v1065 = vld [vmem:[%s8 + $0x38] sm:$0xff]
    %v1066 = vld [vmem:[%s8 + $0x40] sm:$0xff]
    %v1067 = vld [vmem:[%s8 + $0x48] sm:$0xff]
    %v1068 = vld [vmem:[%s8 + $0x50] sm:$0xff]
    %v1069 = vld [vmem:[%s8 + $0x58] sm:$0xff]
    %v1070 = vld [vmem:[%s8 + $0x60] sm:$0xff]
    %v1071 = vld [vmem:[%s8 + $0x68] sm:$0xff]
    %v1072 = vld [vmem:[%s8 + $0x70] sm:$0xff]
    %v1073 = vld [vmem:[%s8 + $0x78] sm:$0xff]
    %1074 = vrot.lane.b32.xlu0 %v1054, 127
    %v1075 = vpop.permute.xlu0 %1074
    %1076 = vrot.lane.b32.xlu0 %v1055, 127
    %v1077 = vpop.permute.xlu0 %1076
    %1078 = vrot.lane.b32.xlu0 %v1056, 127
    %v1079 = vpop.permute.xlu0 %1078
    %1080 = vrot.lane.b32.xlu0 %v1057, 127
    %v1081 = vpop.permute.xlu0 %1080
    %1082 = vrot.lane.b32.xlu0 %v1054, 126
    %v1083 = vpop.permute.xlu0 %1082
    %1084 = vrot.lane.b32.xlu0 %v1055, 126
    %v1085 = vpop.permute.xlu0 %1084
    %1086 = vrot.lane.b32.xlu0 %v1056, 126
    %v1087 = vpop.permute.xlu0 %1086
    %1088 = vrot.lane.b32.xlu0 %v1057, 126
    %v1089 = vpop.permute.xlu0 %1088
    %1090 = vrot.lane.b32.xlu0 %v1054, 125
    %v1091 = vpop.permute.xlu0 %1090
    %1092 = vrot.lane.b32.xlu0 %v1055, 125
    %v1093 = vpop.permute.xlu0 %1092
    %1094 = vrot.lane.b32.xlu0 %v1056, 125
    %v1095 = vpop.permute.xlu0 %1094
    %1096 = vrot.lane.b32.xlu0 %v1057, 125
    %v1097 = vpop.permute.xlu0 %1096
    %1099 = vset.pattern.permute.xlu0 0
    %1100 = vperm.xlu0 %1099, %v1058
    %v1101 = vpop.permute.xlu0 %1100
    %1104 = vset.pattern.permute.xlu0 0
    %1105 = vperm.xlu0 %1104, %v1059
    %v1106 = vpop.permute.xlu0 %1105
    %1109 = vset.pattern.permute.xlu0 0
    %1110 = vperm.xlu0 %1109, %v1060
    %v1111 = vpop.permute.xlu0 %1110
    %1114 = vset.pattern.permute.xlu0 0
    %1115 = vperm.xlu0 %1114, %v1061
    %v1116 = vpop.permute.xlu0 %1115
    %1119 = vset.pattern.permute.xlu0 0
    %1120 = vperm.xlu0 %1119, %v1062
    %v1121 = vpop.permute.xlu0 %1120
    %1124 = vset.pattern.permute.xlu0 0
    %1125 = vperm.xlu0 %1124, %v1063
    %v1126 = vpop.permute.xlu0 %1125
    %1129 = vset.pattern.permute.xlu0 0
    %1130 = vperm.xlu0 %1129, %v1064
    %v1131 = vpop.permute.xlu0 %1130
    %1134 = vset.pattern.permute.xlu0 0
    %1135 = vperm.xlu0 %1134, %v1065
    %v1136 = vpop.permute.xlu0 %1135
    %1139 = vset.pattern.permute.xlu0 0
    %1140 = vperm.xlu0 %1139, %v1066
    %v1141 = vpop.permute.xlu0 %1140
    %1144 = vset.pattern.permute.xlu0 0
    %1145 = vperm.xlu0 %1144, %v1067
    %v1146 = vpop.permute.xlu0 %1145
    %1149 = vset.pattern.permute.xlu0 0
    %1150 = vperm.xlu0 %1149, %v1068
    %v1151 = vpop.permute.xlu0 %1150
    %1154 = vset.pattern.permute.xlu0 0
    %1155 = vperm.xlu0 %1154, %v1069
    %v1156 = vpop.permute.xlu0 %1155
    %1159 = vset.pattern.permute.xlu0 0
    %1160 = vperm.xlu0 %1159, %v1070
    %v1161 = vpop.permute.xlu0 %1160
    %1164 = vset.pattern.permute.xlu0 0
    %1165 = vperm.xlu0 %1164, %v1071
    %v1166 = vpop.permute.xlu0 %1165
    %1169 = vset.pattern.permute.xlu0 0
    %1170 = vperm.xlu0 %1169, %v1072
    %v1171 = vpop.permute.xlu0 %1170
    %1174 = vset.pattern.permute.xlu0 0
    %1175 = vperm.xlu0 %1174, %v1073
    %v1176 = vpop.permute.xlu0 %1175
    %v1178 = vmul.f32 %v1101, %v1054
    %v1179 = vmul.f32 %v1106, %v1055
    %v1180 = vmul.f32 %v1111, %v1056
    %v1181 = vmul.f32 %v1116, %v1057
    %v1182 = vmul.f32 %v1121, %v1075
    %v1183 = vmul.f32 %v1126, %v1077
    %v1184 = vmul.f32 %v1131, %v1079
    %v1185 = vmul.f32 %v1136, %v1081
    %v1186 = vmul.f32 %v1141, %v1083
    %v1187 = vmul.f32 %v1146, %v1085
    %v1188 = vmul.f32 %v1151, %v1087
    %v1189 = vmul.f32 %v1156, %v1089
    %v1190 = vmul.f32 %v1161, %v1091
    %v1191 = vmul.f32 %v1166, %v1093
    %v1192 = vmul.f32 %v1171, %v1095
    %v1193 = vmul.f32 %v1176, %v1097
    %v1194 = vadd.f32 %v1178, %v1179
    %v1195 = vadd.f32 %v1194, %v1180
    %v1196 = vadd.f32 %v1195, %v1181
    %v1197 = vadd.f32 %v1196, %v1182
    %v1198 = vadd.f32 %v1197, %v1183
    %v1199 = vadd.f32 %v1198, %v1184
    %v1200 = vadd.f32 %v1199, %v1185
    %v1201 = vadd.f32 %v1200, %v1186
    %v1202 = vadd.f32 %v1201, %v1187
    %v1203 = vadd.f32 %v1202, %v1188
    %v1204 = vadd.f32 %v1203, %v1189
    %v1205 = vadd.f32 %v1204, %v1190
    %v1206 = vadd.f32 %v1205, %v1191
    %v1207 = vadd.f32 %v1206, %v1192
    %v1208 = vadd.f32 %v1207, %v1193
    %v1209 = vrot.slane %v1208, 4
    %v1210 = vadd.f32 %v1208, %v1209
    %v1211 = vrot.slane %v1210, 2
    %v1212 = vadd.f32 %v1210, %v1211
    %v1213 = vrot.slane %v1212, 1
    %v1214 = vadd.f32 %v1212, %v1213
    %v1215 = vld [vmem:[#allocation2] sm:$0x1]
    %1217 = vset.pattern.permute.xlu0 0
    %1218 = vperm.xlu0 %1217, %v1215
    %v1219 = vpop.permute.xlu0 %1218
    %v1221 = vlaneseq
    %v1222 = vshrl.u32 %v1221, 7
    %v1223 = vsub.s32 0, %v1222
    %v1224 = vrot.slane %v1219, %v1223
    %v1225 = vadd.f32 %v1214, %v1224
    %v1226 = vxor.u32 %v1225, 2147483648
    %v1227 = vmul.f32 %v1226, 1.442695
    %v1228 = vpow.pop %v1227
    %v1229 = vadd.f32 %v1228, 1.0
    %v1230 = vrcp.pop %v1229
    %v1231 = vmul.f32 1.0, %v1230
    %1232 = vst [vmem:[#allocation3] sm:$0x1] %v1231
    // Predicated region
    $region42: #{tpu_custom_call.1} parent=1 // pred_check
      _
    $region43: #{tpu_custom_call.1} parent=1 // pred_check_branch
      %1234 = sbr.rel (0) target = $region45
    $region44: #{tpu_custom_call.1} parent=1 // pred_region
      %s1236 = ssub.s32 16, 16
      %1237 = vsyncadd [#allocation4], %s1236
      %s1239 = sshll.u32 [#allocation3], 4
      %s1240 = int_to_ptr.vmem [resolvable:$true] %s1239
      %1242 = dma.vmem_to_hbm [thread:$0]  %s1240, 16, %s10, [#allocation4]
    $region45: #{tpu_custom_call.1} parent=1 // pred_fallthru
      _
    // Predicated region
    $region46: #{tpu_custom_call.1} parent=1 // pred_check
      _
    $region47: #{tpu_custom_call.1} parent=1 // pred_check_branch
      %1244 = sbr.rel (0) target = $region49
    $region48: #{tpu_custom_call.1} parent=1 // pred_region
      %1245 = dma.done [#allocation4], 16
    $region49: #{tpu_custom_call.1} parent=1 // pred_fallthru
      _
    %1246 = vsyncpa [#allocation4], 1

</llo_original>
